<compile_context>
chip_gen: v7x
topology: tpu7x:2x2x1
jax: 0.10.0
libtpu: 0.0.40
codegen_flags: <defaults>
</compile_context>

<pallas_src>
import functools

import jax
import jax.numpy as jnp
from jax import lax
from jax.experimental import pallas as pl
from jax.experimental.pallas import tpu as pltpu


# ----------------------------------------------------------------------------
# Kernel 1: fused series_decomp + trend accumulation
# ----------------------------------------------------------------------------
def _decomp_trend_kernel(x_ref, trend_ref, res_ref, trend_out_ref, *,
                         kernel_size, n_front, n_end):
    # x_ref/trend_ref: (TB, L, C) VMEM blocks; C on the lane axis.
    x = x_ref[...].astype(jnp.float32)
    tb, seq_len, chan = x.shape

    # Edge-replication padding fused into the kernel (VMEM-only, no HBM pad).
    parts = []
    if n_front > 0:
        parts.append(jnp.broadcast_to(x[:, 0:1, :], (tb, n_front, chan)))
    parts.append(x)
    if n_end > 0:
        parts.append(jnp.broadcast_to(x[:, seq_len - 1:seq_len, :],
                                      (tb, n_end, chan)))
    x_pad = jnp.concatenate(parts, axis=1) if len(parts) > 1 else x

    # Windowed mean (stride=1, L_out == L since n_front + n_end == k - 1).
    # TODO(synk): for large kernel_size, replace the unrolled k-term sum with a
    # sublane-strip running-sum / pltpu.roll formulation (O(1) adds per row).
    acc = jnp.zeros((tb, seq_len, chan), jnp.float32)
    for j in range(kernel_size):
        acc = acc + x_pad[:, j:j + seq_len, :]
    mean = acc * (1.0 / kernel_size)

    # Two fused outputs: seasonal residual and accumulated trend.
    res_ref[...] = (x - mean).astype(res_ref.dtype)
    trend_out_ref[...] = (trend_ref[...].astype(jnp.float32) + mean
                          ).astype(trend_out_ref.dtype)


def _pick_batch_tile(batch, seq_len, chan, itemsize, target_bytes=4 << 20):
    """Largest batch tile that keeps the block a few MB and >=2 grid steps."""
    best = 1
    for tb in range(1, batch + 1):
        if batch % tb != 0:
            continue
        fits = tb * seq_len * chan * itemsize <= target_bytes
        multi_step = (batch // tb) >= 2 or batch == 1
        if fits and multi_step:
            best = tb
    return best


def series_decomp_add_trend(x, trend, kernel_size, block_b=None):
    """(x, trend) -> (x - moving_mean, trend + moving_mean). stride=1."""
    batch, seq_len, chan = x.shape
    assert trend.shape == x.shape
    n_front = kernel_size - 1 - (kernel_size - 1) // 2
    n_end = (kernel_size - 1) // 2  # matches FEDformer for odd k (default 25)

    if block_b is None:
        block_b = _pick_batch_tile(batch, seq_len, chan,
                                   jnp.dtype(x.dtype).itemsize)
    assert batch % block_b == 0
    grid = (batch // block_b,)

    kernel = functools.partial(_decomp_trend_kernel, kernel_size=kernel_size,
                               n_front=n_front, n_end=n_end)
    blk = pl.BlockSpec((block_b, seq_len, chan), lambda b: (b, 0, 0))
    res, trend_out = pl.pallas_call(
        kernel,
        out_shape=(jax.ShapeDtypeStruct((batch, seq_len, chan), x.dtype),
                   jax.ShapeDtypeStruct((batch, seq_len, chan), trend.dtype)),
        grid_spec=pltpu.PrefetchScalarGridSpec(
            num_scalar_prefetch=0,
            grid=grid,
            in_specs=[blk, blk],
            out_specs=(blk, blk),
        ),
        compiler_params=pltpu.CompilerParams(
            dimension_semantics=("parallel",)),
    )(x, trend)
    return res, trend_out


# ----------------------------------------------------------------------------
# Kernel 2: fused LayerNorm (Decoder.norm) + Linear projection (Decoder.projection)
# ----------------------------------------------------------------------------
def _norm_project_kernel(x_ref, gamma_ref, beta_ref, w_ref, b_ref, out_ref, *,
                         eps):
    x = x_ref[...].astype(jnp.float32)                 # (TB, L, C)
    tb = x.shape[0]
    gamma = gamma_ref[...].astype(jnp.float32)         # (1, 1, C)
    beta = beta_ref[...].astype(jnp.float32)           # (1, 1, C)
    w = w_ref[...].astype(jnp.float32)                 # (C, c_out)
    bias = b_ref[...].astype(jnp.float32)[0]           # (1, c_out)

    mu = jnp.mean(x, axis=-1, keepdims=True)
    xc = x - mu
    var = jnp.mean(xc * xc, axis=-1, keepdims=True)
    xn = xc * lax.rsqrt(var + eps) * gamma + beta      # (TB, L, C)

    for i in range(tb):  # small static loop; 2-D MXU matmul per batch row
        y = jnp.dot(xn[i], w, precision=lax.Precision.HIGHEST,
                    preferred_element_type=jnp.float32) + bias
        out_ref[i] = y.astype(out_ref.dtype)


def norm_project(x, gamma, beta, w, b, eps=1e-5, block_b=None):
    batch, seq_len, chan = x.shape
    c_out = w.shape[1]
    if block_b is None:
        block_b = _pick_batch_tile(batch, seq_len, chan,
                                   jnp.dtype(x.dtype).itemsize)
    assert batch % block_b == 0
    grid = (batch // block_b,)

    return pl.pallas_call(
        functools.partial(_norm_project_kernel, eps=eps),
        out_shape=jax.ShapeDtypeStruct((batch, seq_len, c_out), x.dtype),
        grid_spec=pltpu.PrefetchScalarGridSpec(
            num_scalar_prefetch=0,
            grid=grid,
            in_specs=[
                pl.BlockSpec((block_b, seq_len, chan), lambda i: (i, 0, 0)),
                pl.BlockSpec((1, 1, chan), lambda i: (0, 0, 0)),
                pl.BlockSpec((1, 1, chan), lambda i: (0, 0, 0)),
                pl.BlockSpec((chan, c_out), lambda i: (0, 0)),
                pl.BlockSpec((1, 1, c_out), lambda i: (0, 0, 0)),
            ],
            out_specs=pl.BlockSpec((block_b, seq_len, c_out),
                                   lambda i: (i, 0, 0)),
        ),
        compiler_params=pltpu.CompilerParams(
            dimension_semantics=("parallel",)),
    )(x, gamma, beta, w, b)


# ----------------------------------------------------------------------------
# Decoder.forward
# ----------------------------------------------------------------------------
def decoder_forward(x, cross, trend, *, num_layers, kernel_size,
                    gamma, beta, w_proj, b_proj, eps=1e-5, block_b=None):
    # TODO(synk): `cross` (encoder output) feeds the DecoderLayer cross
    # attention, which is defined outside this module spec; it is unused here.
    del cross
    for _ in range(num_layers):
        x, trend = series_decomp_add_trend(x, trend, kernel_size,
                                           block_b=block_b)
    x = norm_project(x, gamma, beta, w_proj, b_proj, eps=eps, block_b=block_b)
    return x, trend


# ----------------------------------------------------------------------------
# Pure-JAX reference (mirrors the PyTorch forward of the implemented path)
# ----------------------------------------------------------------------------
def _ref_series_decomp(x, kernel_size):
    n_front = kernel_size - 1 - (kernel_size - 1) // 2
    n_end = (kernel_size - 1) // 2
    parts = []
    if n_front > 0:
        parts.append(jnp.repeat(x[:, 0:1, :], n_front, axis=1))
    parts.append(x)
    if n_end > 0:
        parts.append(jnp.repeat(x[:, -1:, :], n_end, axis=1))
    x_pad = jnp.concatenate(parts, axis=1)
    seq_len = x.shape[1]
    mean = jnp.stack(
        [x_pad[:, t:t + kernel_size, :].mean(axis=1) for t in range(seq_len)],
        axis=1)
    return x - mean, mean


def _ref_decoder(x, trend, *, num_layers, kernel_size, gamma, beta, w, b, eps):
    for _ in range(num_layers):
        res, mean = _ref_series_decomp(x, kernel_size)
        x = res
        trend = trend + mean
    mu = jnp.mean(x, axis=-1, keepdims=True)
    xc = x - mu
    var = jnp.mean(xc * xc, axis=-1, keepdims=True)
    xn = xc * lax.rsqrt(var + eps) * gamma + beta
    y = jnp.einsum("blc,co->blo", xn, w,
                   precision=lax.Precision.HIGHEST) + b
    return y, trend


if __name__ == "__main__":
    key = jax.random.PRNGKey(0)
    B, L, C = 4, 32, 128          # batch, decoder seq len, d_model (lane-dense)
    C_OUT = 7                     # projection output channels
    KERNEL_SIZE = 25              # FEDformer default moving-average window
    NUM_LAYERS = 2
    EPS = 1e-5

    k1, k2, k3, k4, k5, k6, k7 = jax.random.split(key, 7)
    x = jax.random.normal(k1, (B, L, C), dtype=jnp.float32)
    cross = jax.random.normal(k2, (B, 2 * L, C), dtype=jnp.float32)
    trend0 = jax.random.normal(k3, (B, L, C), dtype=jnp.float32)
    gamma = 1.0 + 0.1 * jax.random.normal(k4, (1, 1, C), dtype=jnp.float32)
    beta = 0.1 * jax.random.normal(k5, (1, 1, C), dtype=jnp.float32)
    w_proj = jax.random.normal(k6, (C, C_OUT), dtype=jnp.float32) / jnp.sqrt(C)
    b_proj = 0.1 * jax.random.normal(k7, (1, 1, C_OUT), dtype=jnp.float32)

    out_x, out_trend = decoder_forward(
        x, cross, trend0,
        num_layers=NUM_LAYERS, kernel_size=KERNEL_SIZE,
        gamma=gamma, beta=beta, w_proj=w_proj, b_proj=b_proj, eps=EPS)
    out_x, out_trend = jax.block_until_ready((out_x, out_trend))

    ref_x, ref_trend = _ref_decoder(
        x, trend0, num_layers=NUM_LAYERS, kernel_size=KERNEL_SIZE,
        gamma=gamma, beta=beta, w=w_proj, b=b_proj, eps=EPS)

    assert out_x.shape == ref_x.shape, (out_x.shape, ref_x.shape)
    assert out_trend.shape == ref_trend.shape, (out_trend.shape, ref_trend.shape)
    assert jnp.allclose(out_trend, ref_trend, atol=1e-4, rtol=1e-4), \
        "trend mismatch vs reference"
    assert jnp.allclose(out_x, ref_x, atol=1e-3, rtol=1e-3), \
        "seasonal/projection mismatch vs reference"

    print("KERNEL_OK")
</pallas_src>

<mosaic_0001>
module attributes {stable_mosaic.version = 11 : i64} {
  func.func @_decomp_trend_kernel(%arg0: i32, %arg1: memref<2x32x128xf32, #tpu.memory_space<vmem>>, %arg2: memref<2x32x128xf32, #tpu.memory_space<vmem>>, %arg3: memref<2x32x128xf32, #tpu.memory_space<vmem>>, %arg4: memref<2x32x128xf32, #tpu.memory_space<vmem>>) attributes {dimension_semantics = [#tpu.dimension_semantics<parallel>], iteration_bounds = array<i64: 2>, scalar_prefetch = 0 : i64, scratch_operands = 0 : i64, tpu.core_type = #tpu.core_type<tc>, window_params = [{transform_indices = @transform_0, window_bounds = array<i64: 2, 32, 128>}, {transform_indices = @transform_1, window_bounds = array<i64: 2, 32, 128>}, {transform_indices = @transform_2, window_bounds = array<i64: 2, 32, 128>}, {transform_indices = @transform_3, window_bounds = array<i64: 2, 32, 128>}]} {
    %c0 = arith.constant 0 : index
    %c0_0 = arith.constant 0 : index
    %c0_1 = arith.constant 0 : index
    %0 = vector.load %arg1[%c0, %c0_0, %c0_1] : memref<2x32x128xf32, #tpu.memory_space<vmem>>, vector<2x32x128xf32>
    %1 = vector.extract_strided_slice %0 {offsets = [0, 0, 0], sizes = [2, 1, 128], strides = [1, 1, 1]} : vector<2x32x128xf32> to vector<2x1x128xf32>
    %2 = vector.shape_cast %1 : vector<2x1x128xf32> to vector<2x1x128xf32>
    %3 = vector.broadcast %2 : vector<2x1x128xf32> to vector<2x12x128xf32>
    %4 = vector.extract_strided_slice %0 {offsets = [0, 31, 0], sizes = [2, 1, 128], strides = [1, 1, 1]} : vector<2x32x128xf32> to vector<2x1x128xf32>
    %5 = vector.shape_cast %4 : vector<2x1x128xf32> to vector<2x1x128xf32>
    %6 = vector.broadcast %5 : vector<2x1x128xf32> to vector<2x12x128xf32>
    %7 = tpu.concatenate %3, %0, %6 in 1 : vector<2x12x128xf32>, vector<2x32x128xf32>, vector<2x12x128xf32> -> vector<2x56x128xf32>
    %cst = arith.constant 0.000000e+00 : f32
    %8 = vector.broadcast %cst : f32 to vector<2x32x128xf32>
    %9 = vector.extract_strided_slice %7 {offsets = [0, 0, 0], sizes = [2, 32, 128], strides = [1, 1, 1]} : vector<2x56x128xf32> to vector<2x32x128xf32>
    %10 = arith.addf %8, %9 : vector<2x32x128xf32>
    %11 = vector.extract_strided_slice %7 {offsets = [0, 1, 0], sizes = [2, 32, 128], strides = [1, 1, 1]} : vector<2x56x128xf32> to vector<2x32x128xf32>
    %12 = arith.addf %10, %11 : vector<2x32x128xf32>
    %13 = vector.extract_strided_slice %7 {offsets = [0, 2, 0], sizes = [2, 32, 128], strides = [1, 1, 1]} : vector<2x56x128xf32> to vector<2x32x128xf32>
    %14 = arith.addf %12, %13 : vector<2x32x128xf32>
    %15 = vector.extract_strided_slice %7 {offsets = [0, 3, 0], sizes = [2, 32, 128], strides = [1, 1, 1]} : vector<2x56x128xf32> to vector<2x32x128xf32>
    %16 = arith.addf %14, %15 : vector<2x32x128xf32>
    %17 = vector.extract_strided_slice %7 {offsets = [0, 4, 0], sizes = [2, 32, 128], strides = [1, 1, 1]} : vector<2x56x128xf32> to vector<2x32x128xf32>
    %18 = arith.addf %16, %17 : vector<2x32x128xf32>
    %19 = vector.extract_strided_slice %7 {offsets = [0, 5, 0], sizes = [2, 32, 128], strides = [1, 1, 1]} : vector<2x56x128xf32> to vector<2x32x128xf32>
    %20 = arith.addf %18, %19 : vector<2x32x128xf32>
    %21 = vector.extract_strided_slice %7 {offsets = [0, 6, 0], sizes = [2, 32, 128], strides = [1, 1, 1]} : vector<2x56x128xf32> to vector<2x32x128xf32>
    %22 = arith.addf %20, %21 : vector<2x32x128xf32>
    %23 = vector.extract_strided_slice %7 {offsets = [0, 7, 0], sizes = [2, 32, 128], strides = [1, 1, 1]} : vector<2x56x128xf32> to vector<2x32x128xf32>
    %24 = arith.addf %22, %23 : vector<2x32x128xf32>
    %25 = vector.extract_strided_slice %7 {offsets = [0, 8, 0], sizes = [2, 32, 128], strides = [1, 1, 1]} : vector<2x56x128xf32> to vector<2x32x128xf32>
    %26 = arith.addf %24, %25 : vector<2x32x128xf32>
    %27 = vector.extract_strided_slice %7 {offsets = [0, 9, 0], sizes = [2, 32, 128], strides = [1, 1, 1]} : vector<2x56x128xf32> to vector<2x32x128xf32>
    %28 = arith.addf %26, %27 : vector<2x32x128xf32>
    %29 = vector.extract_strided_slice %7 {offsets = [0, 10, 0], sizes = [2, 32, 128], strides = [1, 1, 1]} : vector<2x56x128xf32> to vector<2x32x128xf32>
    %30 = arith.addf %28, %29 : vector<2x32x128xf32>
    %31 = vector.extract_strided_slice %7 {offsets = [0, 11, 0], sizes = [2, 32, 128], strides = [1, 1, 1]} : vector<2x56x128xf32> to vector<2x32x128xf32>
    %32 = arith.addf %30, %31 : vector<2x32x128xf32>
    %33 = vector.extract_strided_slice %7 {offsets = [0, 12, 0], sizes = [2, 32, 128], strides = [1, 1, 1]} : vector<2x56x128xf32> to vector<2x32x128xf32>
    %34 = arith.addf %32, %33 : vector<2x32x128xf32>
    %35 = vector.extract_strided_slice %7 {offsets = [0, 13, 0], sizes = [2, 32, 128], strides = [1, 1, 1]} : vector<2x56x128xf32> to vector<2x32x128xf32>
    %36 = arith.addf %34, %35 : vector<2x32x128xf32>
    %37 = vector.extract_strided_slice %7 {offsets = [0, 14, 0], sizes = [2, 32, 128], strides = [1, 1, 1]} : vector<2x56x128xf32> to vector<2x32x128xf32>
    %38 = arith.addf %36, %37 : vector<2x32x128xf32>
    %39 = vector.extract_strided_slice %7 {offsets = [0, 15, 0], sizes = [2, 32, 128], strides = [1, 1, 1]} : vector<2x56x128xf32> to vector<2x32x128xf32>
    %40 = arith.addf %38, %39 : vector<2x32x128xf32>
    %41 = vector.extract_strided_slice %7 {offsets = [0, 16, 0], sizes = [2, 32, 128], strides = [1, 1, 1]} : vector<2x56x128xf32> to vector<2x32x128xf32>
    %42 = arith.addf %40, %41 : vector<2x32x128xf32>
    %43 = vector.extract_strided_slice %7 {offsets = [0, 17, 0], sizes = [2, 32, 128], strides = [1, 1, 1]} : vector<2x56x128xf32> to vector<2x32x128xf32>
    %44 = arith.addf %42, %43 : vector<2x32x128xf32>
    %45 = vector.extract_strided_slice %7 {offsets = [0, 18, 0], sizes = [2, 32, 128], strides = [1, 1, 1]} : vector<2x56x128xf32> to vector<2x32x128xf32>
    %46 = arith.addf %44, %45 : vector<2x32x128xf32>
    %47 = vector.extract_strided_slice %7 {offsets = [0, 19, 0], sizes = [2, 32, 128], strides = [1, 1, 1]} : vector<2x56x128xf32> to vector<2x32x128xf32>
    %48 = arith.addf %46, %47 : vector<2x32x128xf32>
    %49 = vector.extract_strided_slice %7 {offsets = [0, 20, 0], sizes = [2, 32, 128], strides = [1, 1, 1]} : vector<2x56x128xf32> to vector<2x32x128xf32>
    %50 = arith.addf %48, %49 : vector<2x32x128xf32>
    %51 = vector.extract_strided_slice %7 {offsets = [0, 21, 0], sizes = [2, 32, 128], strides = [1, 1, 1]} : vector<2x56x128xf32> to vector<2x32x128xf32>
    %52 = arith.addf %50, %51 : vector<2x32x128xf32>
    %53 = vector.extract_strided_slice %7 {offsets = [0, 22, 0], sizes = [2, 32, 128], strides = [1, 1, 1]} : vector<2x56x128xf32> to vector<2x32x128xf32>
    %54 = arith.addf %52, %53 : vector<2x32x128xf32>
    %55 = vector.extract_strided_slice %7 {offsets = [0, 23, 0], sizes = [2, 32, 128], strides = [1, 1, 1]} : vector<2x56x128xf32> to vector<2x32x128xf32>
    %56 = arith.addf %54, %55 : vector<2x32x128xf32>
    %57 = vector.extract_strided_slice %7 {offsets = [0, 24, 0], sizes = [2, 32, 128], strides = [1, 1, 1]} : vector<2x56x128xf32> to vector<2x32x128xf32>
    %58 = arith.addf %56, %57 : vector<2x32x128xf32>
    %cst_2 = arith.constant 4.000000e-02 : f32
    %59 = vector.broadcast %cst_2 : f32 to vector<2x32x128xf32>
    %60 = arith.mulf %58, %59 : vector<2x32x128xf32>
    %61 = arith.subf %0, %60 : vector<2x32x128xf32>
    %c0_3 = arith.constant 0 : index
    %c0_4 = arith.constant 0 : index
    %c0_5 = arith.constant 0 : index
    %62 = vector.load %arg3[%c0_3, %c0_4, %c0_5] : memref<2x32x128xf32, #tpu.memory_space<vmem>>, vector<2x32x128xf32>
    tpu.vector_store %arg3[%c0_3, %c0_4, %c0_5], %61 {strides = array<i32>} : memref<2x32x128xf32, #tpu.memory_space<vmem>>, vector<2x32x128xf32>,
    %c0_6 = arith.constant 0 : index
    %c0_7 = arith.constant 0 : index
    %c0_8 = arith.constant 0 : index
    %63 = vector.load %arg2[%c0_6, %c0_7, %c0_8] : memref<2x32x128xf32, #tpu.memory_space<vmem>>, vector<2x32x128xf32>
    %64 = arith.addf %63, %60 : vector<2x32x128xf32>
    %c0_9 = arith.constant 0 : index
    %c0_10 = arith.constant 0 : index
    %c0_11 = arith.constant 0 : index
    %65 = vector.load %arg4[%c0_9, %c0_10, %c0_11] : memref<2x32x128xf32, #tpu.memory_space<vmem>>, vector<2x32x128xf32>
    tpu.vector_store %arg4[%c0_9, %c0_10, %c0_11], %64 {strides = array<i32>} : memref<2x32x128xf32, #tpu.memory_space<vmem>>, vector<2x32x128xf32>,
    return
  }
  func.func @transform_0(%arg0: i32) -> (i32, i32, i32) {
    %c0_i32 = arith.constant 0 : i32
    %c0_i32_0 = arith.constant 0 : i32
    %c0_i32_1 = arith.constant 0 : i32
    return %arg0, %c0_i32, %c0_i32_0 : i32, i32, i32
  }
  func.func @transform_1(%arg0: i32) -> (i32, i32, i32) {
    %c0_i32 = arith.constant 0 : i32
    %c0_i32_0 = arith.constant 0 : i32
    %c0_i32_1 = arith.constant 0 : i32
    return %arg0, %c0_i32, %c0_i32_0 : i32, i32, i32
  }
  func.func @transform_2(%arg0: i32) -> (i32, i32, i32) {
    %c0_i32 = arith.constant 0 : i32
    %c0_i32_0 = arith.constant 0 : i32
    %c0_i32_1 = arith.constant 0 : i32
    return %arg0, %c0_i32, %c0_i32_0 : i32, i32, i32
  }
  func.func @transform_3(%arg0: i32) -> (i32, i32, i32) {
    %c0_i32 = arith.constant 0 : i32
    %c0_i32_0 = arith.constant 0 : i32
    %c0_i32_1 = arith.constant 0 : i32
    return %arg0, %c0_i32, %c0_i32_0 : i32, i32, i32
  }
}

</mosaic_0001>

<llo_original>
// kernel: tpu_custom_call.1
$region0: #{tpu_custom_call.1}
  #allocation0 [shape = 'u32[]', space=smem, size = 0x4, offset = 0x4, fixed_abs, tag = 'smem constant byte address 0x4 - core index']
  #allocation1 [shape = 'u32[144,128]{1,0:T(1,128)}', space=vmem, size = 0x12000, scoped, tag = 'internal scratch']
  %s0 = inlined_call_operand.hbm [shape: f32[4,32,128], index: 0, kind: input, shape index: {}]
  %s1 = inlined_call_operand.hbm [shape: f32[4,32,128], index: 1, kind: input, shape index: {}]
  %s2 = inlined_call_operand.hbm [shape: f32[4,32,128], index: 2, kind: output, shape index: {0}]
  %s3 = inlined_call_operand.hbm [shape: f32[4,32,128], index: 3, kind: output, shape index: {1}]
  %4 = xla_tuple %s2, %s3
  %s5 = sld [smem:[#allocation0]]
  $region57: #{tpu_custom_call.1} parent=0
    _
  %s7 = ssub.s32 1, %s5
  %s8 = scalar_select 0, %s7, %s5
  $region1: #{tpu_custom_call.1} parent=0
    #allocation2 [shape = 'u8[65536]{0}', space=vmem, size = 0x10000, scoped, tag = 'input window, operand 0']
    #allocation3 [shape = 's32[2]{0}', space=sflag, size = 0x8, scoped, tag = 'scoped memory for tpu_custom_call.1']
    #allocation4 [shape = 's32[2]{0}', space=sflag, size = 0x8, scoped, tag = 'scoped memory for tpu_custom_call.1']
    #allocation5 [shape = 'u8[65536]{0}', space=vmem, size = 0x10000, scoped, tag = 'input window, operand 1']
    #allocation6 [shape = 's32[2]{0}', space=sflag, size = 0x8, scoped, tag = 'scoped memory for tpu_custom_call.1']
    #allocation7 [shape = 'u8[65536]{0}', space=vmem, size = 0x10000, scoped, tag = 'output window, operand 0']
    #allocation8 [shape = 'u8[65536]{0}', space=vmem, size = 0x10000, scoped, tag = 'output window, operand 1']
    #allocation9 [shape = 's32[2]{0}', space=sflag, size = 0x8, scoped, tag = 'scoped memory for tpu_custom_call.1']
    %9 = vsyncpa [#allocation3], 0
    %s10 = scalar_lea.sflag [#allocation3], 1
    %11 = vsyncpa %s10, 0
    %12 = vsyncpa [#allocation6], 0
    %s13 = scalar_lea.sflag [#allocation6], 1
    %14 = vsyncpa %s13, 0
    %15 = vsyncpa [#allocation4], 0
    %s16 = scalar_lea.sflag [#allocation4], 1
    %17 = vsyncpa %s16, 0
    %18 = vsyncpa [#allocation9], 0
    %s19 = scalar_lea.sflag [#allocation9], 1
    %20 = vsyncpa %s19, 0
    loop: start=0, step=1, limit=4
    $region2: #{tpu_custom_call.1} parent=1 // loop_pre_header
      _
    $region3: #{tpu_custom_call.1} parent=1 // loop_header
      %s22 = sphi 0, %s26
      %p23 = scmp.ge.s32.totalorder %s22, 4
      %s32 = sphi 0, %s34
      %s35 = sphi 0, %s32
      %s36 = sphi 0, %s35
      %s52 = sphi 0, %s36
      %s58 = sphi 0, %s60
      %s61 = sphi 0, %s58
      %s62 = sphi 0, %s61
      %s78 = sphi 0, %s62
      %s84 = sphi 0, %s86
      %s87 = sphi 0, %s84
      %s88 = sphi 0, %s87
      %s104 = sphi 0, %s88
      %s110 = sphi 0, %s112
      %s113 = sphi 0, %s110
      %s114 = sphi 0, %s113
      %s130 = sphi 0, %s114
    $region4: #{tpu_custom_call.1} parent=1 // loop_header_branch
      %25 = sbr.rel (%p23) target = $region8
    $region5: #{tpu_custom_call.1} parent=1 // loop_body
      %s27 = ssub.s32 %s22, 1
      %s28 = ssub.s32 %s22, 2
      %s29 = sadd.s32 %s22, 1
      %s30 = ssub.s32 %s22, %s29
      %p31 = scmp.eq.s32.totalorder %s30, 0
      %s33 = sadd.s32 %s32, 1
      %s34 = scalar_select %p31, %s32, %s33
      %p37 = pneg %p31
      %p38 = scmp.eq.s32.totalorder %s22, 1
      %p39 = por %p37, %p38
      %p40 = scmp.ne.s32.totalorder %s32, %s35
      %p41 = scmp.eq.s32.totalorder %s22, 0
      %p42 = por %p40, %p41
      %p43 = scmp.ne.s32.totalorder %s32, %s35
      %p44 = scmp.eq.s32.totalorder %s27, 1
      %p45 = por %p43, %p44
      %p46 = scmp.ne.s32.totalorder %s35, %s36
      %p47 = scmp.eq.s32.totalorder %s27, 0
      %p48 = por %p46, %p47
      %p49 = scmp.ne.s32.totalorder %s35, %s36
      %p50 = scmp.eq.s32.totalorder %s28, 1
      %p51 = por %p49, %p50
      %p53 = scmp.ne.s32.totalorder %s36, %s52
      %p54 = scmp.eq.s32.totalorder %s28, 0
      %p55 = por %p53, %p54
      %s56 = ssub.s32 %s22, %s29
      %p57 = scmp.eq.s32.totalorder %s56, 0
      %s59 = sadd.s32 %s58, 1
      %s60 = scalar_select %p57, %s58, %s59
      %p63 = pneg %p57
      %p64 = scmp.eq.s32.totalorder %s22, 1
      %p65 = por %p63, %p64
      %p66 = scmp.ne.s32.totalorder %s58, %s61
      %p67 = scmp.eq.s32.totalorder %s22, 0
      %p68 = por %p66, %p67
      %p69 = scmp.ne.s32.totalorder %s58, %s61
      %p70 = scmp.eq.s32.totalorder %s27, 1
      %p71 = por %p69, %p70
      %p72 = scmp.ne.s32.totalorder %s61, %s62
      %p73 = scmp.eq.s32.totalorder %s27, 0
      %p74 = por %p72, %p73
      %p75 = scmp.ne.s32.totalorder %s61, %s62
      %p76 = scmp.eq.s32.totalorder %s28, 1
      %p77 = por %p75, %p76
      %p79 = scmp.ne.s32.totalorder %s62, %s78
      %p80 = scmp.eq.s32.totalorder %s28, 0
      %p81 = por %p79, %p80
      %s82 = ssub.s32 %s22, %s29
      %p83 = scmp.eq.s32.totalorder %s82, 0
      %s85 = sadd.s32 %s84, 1
      %s86 = scalar_select %p83, %s84, %s85
      %p89 = pneg %p83
      %p90 = scmp.eq.s32.totalorder %s22, 1
      %p91 = por %p89, %p90
      %p92 = scmp.ne.s32.totalorder %s84, %s87
      %p93 = scmp.eq.s32.totalorder %s22, 0
      %p94 = por %p92, %p93
      %p95 = scmp.ne.s32.totalorder %s84, %s87
      %p96 = scmp.eq.s32.totalorder %s27, 1
      %p97 = por %p95, %p96
      %p98 = scmp.ne.s32.totalorder %s87, %s88
      %p99 = scmp.eq.s32.totalorder %s27, 0
      %p100 = por %p98, %p99
      %p101 = scmp.ne.s32.totalorder %s87, %s88
      %p102 = scmp.eq.s32.totalorder %s28, 1
      %p103 = por %p101, %p102
      %p105 = scmp.ne.s32.totalorder %s88, %s104
      %p106 = scmp.eq.s32.totalorder %s28, 0
      %p107 = por %p105, %p106
      %s108 = ssub.s32 %s22, %s29
      %p109 = scmp.eq.s32.totalorder %s108, 0
      %s111 = sadd.s32 %s110, 1
      %s112 = scalar_select %p109, %s110, %s111
      %p115 = pneg %p109
      %p116 = scmp.eq.s32.totalorder %s22, 1
      %p117 = por %p115, %p116
      %p118 = scmp.ne.s32.totalorder %s110, %s113
      %p119 = scmp.eq.s32.totalorder %s22, 0
      %p120 = por %p118, %p119
      %p121 = scmp.ne.s32.totalorder %s110, %s113
      %p122 = scmp.eq.s32.totalorder %s27, 1
      %p123 = por %p121, %p122
      %p124 = scmp.ne.s32.totalorder %s113, %s114
      %p125 = scmp.eq.s32.totalorder %s27, 0
      %p126 = por %p124, %p125
      %p127 = scmp.ne.s32.totalorder %s113, %s114
      %p128 = scmp.eq.s32.totalorder %s28, 1
      %p129 = por %p127, %p128
      %p131 = scmp.ne.s32.totalorder %s114, %s130
      %p132 = scmp.eq.s32.totalorder %s28, 0
      %p133 = por %p131, %p132
      %p134 = scmp.le.s32.totalorder 1, %s22
      %p135 = scmp.lt.s32.totalorder %s22, 3
      %p136 = pnand %p134, %p135
      %p137 = pneg %p136
      // Predicated region
      $region9: #{tpu_custom_call.1} parent=5 // pred_check
        _
      $region10: #{tpu_custom_call.1} parent=5 // pred_check_branch
        %139 = sbr.rel (%p136) target = $region12
      $region11: #{tpu_custom_call.1} parent=5 // pred_region
        %s140 = ssub.s32 %s22, 1
      $region12: #{tpu_custom_call.1} parent=5 // pred_fallthru
        _
      %p141 = scmp.lt.s32.totalorder %s22, 2
      // Predicated region
      $region13: #{tpu_custom_call.1} parent=5 // pred_check
        %p142 = pneg %p141
      $region14: #{tpu_custom_call.1} parent=5 // pred_check_branch
        %144 = sbr.rel (%p142) target = $region16
      $region15: #{tpu_custom_call.1} parent=5 // pred_region
        // Predicated region
        $region17: #{tpu_custom_call.1} parent=15 // pred_check
          %p145 = pneg %p42
        $region18: #{tpu_custom_call.1} parent=15 // pred_check_branch
          %147 = sbr.rel (%p145) target = $region20
        $region19: #{tpu_custom_call.1} parent=15 // pred_region
          %s148 = sand.u32 %s32, 1
          %s149 = scalar_lea.sflag [#allocation3], %s148
          %s150 = sand.u32 %s32, 1
          %s151 = smul.addr %s150, 64
          %s152 = scalar_lea.vmem [#allocation2], %s151
          %s153 = smul.u32 2, %s22
          %s155 = ssub.s32 1024, 1024
          %156 = vsyncadd %s149, %s155
          %s157 = smul.addr %s153, 4
          %s158 = smul.addr %s157, 128
          %s159 = scalar_lea.hbm %s0, %s158
          %s160 = sshll.u32 %s152, 4
          %s161 = int_to_ptr.vmem [resolvable:$true] %s160
          %166 = dma.hbm_to_vmem [thread:$0]  %s159, 1024, %s161, %s149, 128, 128, 8
        $region20: #{tpu_custom_call.1} parent=15 // pred_fallthru
          _
        // Predicated region
        $region21: #{tpu_custom_call.1} parent=15 // pred_check
          %p167 = pneg %p68
        $region22: #{tpu_custom_call.1} parent=15 // pred_check_branch
          %169 = sbr.rel (%p167) target = $region24
        $region23: #{tpu_custom_call.1} parent=15 // pred_region
          %s170 = sand.u32 %s58, 1
          %s171 = scalar_lea.sflag [#allocation6], %s170
          %s172 = sand.u32 %s58, 1
          %s173 = smul.addr %s172, 64
          %s174 = scalar_lea.vmem [#allocation5], %s173
          %s175 = smul.u32 2, %s22
          %s177 = ssub.s32 1024, 1024
          %178 = vsyncadd %s171, %s177
          %s179 = smul.addr %s175, 4
          %s180 = smul.addr %s179, 128
          %s181 = scalar_lea.hbm %s1, %s180
          %s182 = sshll.u32 %s174, 4
          %s183 = int_to_ptr.vmem [resolvable:$true] %s182
          %188 = dma.hbm_to_vmem [thread:$0]  %s181, 1024, %s183, %s171, 128, 128, 8
        $region24: #{tpu_custom_call.1} parent=15 // pred_fallthru
          _
      $region16: #{tpu_custom_call.1} parent=5 // pred_fallthru
        _
      %p189 = scmp.le.s32.totalorder 1, %s22
      %p190 = scmp.lt.s32.totalorder %s22, 3
      %p191 = pnand %p189, %p190
      %p192 = pneg %p191
      // Predicated region
      $region25: #{tpu_custom_call.1} parent=5 // pred_check
        _
      $region26: #{tpu_custom_call.1} parent=5 // pred_check_branch
        %194 = sbr.rel (%p191) target = $region28
      $region27: #{tpu_custom_call.1} parent=5 // pred_region
        %s195 = ssub.s32 %s22, 1
        %s196 = sand.u32 %s35, 1
        %s197 = scalar_lea.sflag [#allocation3], %s196
        %s198 = sand.u32 %s35, 1
        %s199 = smul.addr %s198, 64
        %s200 = scalar_lea.vmem [#allocation2], %s199
        // Predicated region
        $region29: #{tpu_custom_call.1} parent=27 // pred_check
          %p201 = pneg %p48
        $region30: #{tpu_custom_call.1} parent=27 // pred_check_branch
          %203 = sbr.rel (%p201) target = $region32
        $region31: #{tpu_custom_call.1} parent=27 // pred_region
          %204 = dma.done %s197, 1024
        $region32: #{tpu_custom_call.1} parent=27 // pred_fallthru
          _
        %s205 = sand.u32 %s61, 1
        %s206 = scalar_lea.sflag [#allocation6], %s205
        %s207 = sand.u32 %s61, 1
        %s208 = smul.addr %s207, 64
        %s209 = scalar_lea.vmem [#allocation5], %s208
        // Predicated region
        $region33: #{tpu_custom_call.1} parent=27 // pred_check
          %p210 = pneg %p74
        $region34: #{tpu_custom_call.1} parent=27 // pred_check_branch
          %212 = sbr.rel (%p210) target = $region36
        $region35: #{tpu_custom_call.1} parent=27 // pred_region
          %213 = dma.done %s206, 1024
        $region36: #{tpu_custom_call.1} parent=27 // pred_fallthru
          _
        %s214 = sand.u32 %s35, 1
        %s215 = scalar_lea.sflag [#allocation3], %s214
        %s216 = sand.u32 %s35, 1
        %s217 = smul.addr %s216, 64
        %s218 = scalar_lea.vmem [#allocation2], %s217
        %p219 = pneg %p48
        %p220 = pneg %p45
        %s221 = sand.u32 %s61, 1
        %s222 = scalar_lea.sflag [#allocation6], %s221
        %s223 = sand.u32 %s61, 1
        %s224 = smul.addr %s223, 64
        %s225 = scalar_lea.vmem [#allocation5], %s224
        %p226 = pneg %p74
        %p227 = pneg %p71
        %p228 = pneg %p100
        %p229 = pneg %p97
        %s230 = sand.u32 %s87, 1
        %s231 = scalar_lea.sflag [#allocation4], %s230
        %s232 = sand.u32 %s87, 1
        %s233 = smul.addr %s232, 64
        %s234 = scalar_lea.vmem [#allocation7], %s233
        %p235 = pneg %p126
        %p236 = pneg %p123
        %s237 = sand.u32 %s113, 1
        %s238 = scalar_lea.sflag [#allocation9], %s237
        %s239 = sand.u32 %s113, 1
        %s240 = smul.addr %s239, 64
        %s241 = scalar_lea.vmem [#allocation8], %s240
        %s242 = smul.u32 2, %s27
        %s243 = smul.u32 2, %s27
        %s244 = smul.u32 2, %s27
        %s245 = smul.u32 2, %s27
        %v246 = vld [vmem:[%s200] sm:$0xff]
        %v247 = vld [vmem:[%s200 + $0x8] sm:$0xff]
        %v248 = vld [vmem:[%s200 + $0x10] sm:$0xff]
        %v249 = vld [vmem:[%s200 + $0x18] sm:$0xff]
        %v250 = vld [vmem:[%s200 + $0x20] sm:$0xff]
        %v251 = vld [vmem:[%s200 + $0x28] sm:$0xff]
        %v252 = vld [vmem:[%s200 + $0x30] sm:$0xff]
        %v253 = vld [vmem:[%s200 + $0x38] sm:$0xff]
        %v254 = vlaneseq
        %v255 = vshrl.u32 %v254, 7
        %v256 = vsub.s32 0, %v255
        %v257 = vrot.slane %v246, %v256
        %v258 = vlaneseq
        %v259 = vshrl.u32 %v258, 7
        %v260 = vsub.s32 0, %v259
        %v261 = vrot.slane %v250, %v260
        %v262 = vlaneseq
        %v263 = vshrl.u32 %v262, 7
        %v264 = vsub.s32 7, %v263
        %v265 = vrot.slane %v249, %v264
        %v266 = vlaneseq
        %v267 = vshrl.u32 %v266, 7
        %v268 = vsub.s32 7, %v267
        %v269 = vrot.slane %v253, %v268
        %vm280 = vcmask 1043456
        %v281 = vrot.slane %v246, 4
        %v282 = vrot.slane %v247, 4
        %v283 = vsel %vm280, %v281, %v282
        %v284 = vrot.slane %v248, 4
        %v285 = vsel %vm280, %v282, %v284
        %v286 = vrot.slane %v249, 4
        %v287 = vsel %vm280, %v284, %v286
        %v288 = vrot.slane %v250, 4
        %v289 = vrot.slane %v251, 4
        %v290 = vsel %vm280, %v288, %v289
        %v291 = vrot.slane %v252, 4
        %v292 = vsel %vm280, %v289, %v291
        %v293 = vrot.slane %v253, 4
        %v294 = vsel %vm280, %v291, %v293
        %v307 = vsel %vm280, %v257, %v281
        %v308 = vsel %vm280, %v261, %v288
        %v309 = vsel %vm280, %v286, %v265
        %v310 = vsel %vm280, %v293, %v269
        %v311 = vadd.f32 %v257, 0.0
        %v312 = vadd.f32 %v307, 0.0
        %v313 = vadd.f32 %v283, 0.0
        %v314 = vadd.f32 %v285, 0.0
        %v315 = vadd.f32 %v261, 0.0
        %v316 = vadd.f32 %v308, 0.0
        %v317 = vadd.f32 %v290, 0.0
        %v318 = vadd.f32 %v292, 0.0
        %vm321 = vcmask 1046528
        %v322 = vrot.slane %v257, 1
        %v323 = vrot.slane %v307, 1
        %v324 = vsel %vm321, %v322, %v323
        %v325 = vrot.slane %v283, 1
        %v326 = vsel %vm321, %v323, %v325
        %v327 = vrot.slane %v285, 1
        %v328 = vsel %vm321, %v325, %v327
        %v329 = vrot.slane %v287, 1
        %v330 = vsel %vm321, %v327, %v329
        %v331 = vrot.slane %v261, 1
        %v332 = vrot.slane %v308, 1
        %v333 = vsel %vm321, %v331, %v332
        %v334 = vrot.slane %v290, 1
        %v335 = vsel %vm321, %v332, %v334
        %v336 = vrot.slane %v292, 1
        %v337 = vsel %vm321, %v334, %v336
        %v338 = vrot.slane %v294, 1
        %v339 = vsel %vm321, %v336, %v338
        %v348 = vadd.f32 %v311, %v324
        %v349 = vadd.f32 %v312, %v326
        %v350 = vadd.f32 %v313, %v328
        %v351 = vadd.f32 %v314, %v330
        %v352 = vadd.f32 %v315, %v333
        %v353 = vadd.f32 %v316, %v335
        %v354 = vadd.f32 %v317, %v337
        %v355 = vadd.f32 %v318, %v339
        %vm356 = vcmask 1045504
        %v357 = vrot.slane %v257, 2
        %v358 = vrot.slane %v307, 2
        %v359 = vsel %vm356, %v357, %v358
        %v360 = vrot.slane %v283, 2
        %v361 = vsel %vm356, %v358, %v360
        %v362 = vrot.slane %v285, 2
        %v363 = vsel %vm356, %v360, %v362
        %v364 = vrot.slane %v287, 2
        %v365 = vsel %vm356, %v362, %v364
        %v366 = vrot.slane %v261, 2
        %v367 = vrot.slane %v308, 2
        %v368 = vsel %vm356, %v366, %v367
        %v369 = vrot.slane %v290, 2
        %v370 = vsel %vm356, %v367, %v369
        %v371 = vrot.slane %v292, 2
        %v372 = vsel %vm356, %v369, %v371
        %v373 = vrot.slane %v294, 2
        %v374 = vsel %vm356, %v371, %v373
        %v383 = vadd.f32 %v348, %v359
        %v384 = vadd.f32 %v349, %v361
        %v385 = vadd.f32 %v350, %v363
        %v386 = vadd.f32 %v351, %v365
        %v387 = vadd.f32 %v352, %v368
        %v388 = vadd.f32 %v353, %v370
        %v389 = vadd.f32 %v354, %v372
        %v390 = vadd.f32 %v355, %v374
        %vm391 = vcmask 1044480
        %v392 = vrot.slane %v257, 3
        %v393 = vrot.slane %v307, 3
        %v394 = vsel %vm391, %v392, %v393
        %v395 = vrot.slane %v283, 3
        %v396 = vsel %vm391, %v393, %v395
        %v397 = vrot.slane %v285, 3
        %v398 = vsel %vm391, %v395, %v397
        %v399 = vrot.slane %v287, 3
        %v400 = vsel %vm391, %v397, %v399
        %v401 = vrot.slane %v261, 3
        %v402 = vrot.slane %v308, 3
        %v403 = vsel %vm391, %v401, %v402
        %v404 = vrot.slane %v290, 3
        %v405 = vsel %vm391, %v402, %v404
        %v406 = vrot.slane %v292, 3
        %v407 = vsel %vm391, %v404, %v406
        %v408 = vrot.slane %v294, 3
        %v409 = vsel %vm391, %v406, %v408
        %v418 = vadd.f32 %v383, %v394
        %v419 = vadd.f32 %v384, %v396
        %v420 = vadd.f32 %v385, %v398
        %v421 = vadd.f32 %v386, %v400
        %v422 = vadd.f32 %v387, %v403
        %v423 = vadd.f32 %v388, %v405
        %v424 = vadd.f32 %v389, %v407
        %v425 = vadd.f32 %v390, %v409
        %v426 = vrot.slane %v257, 4
        %v427 = vrot.slane %v307, 4
        %v428 = vsel %vm280, %v426, %v427
        %v429 = vrot.slane %v283, 4
        %v430 = vsel %vm280, %v427, %v429
        %v431 = vrot.slane %v285, 4
        %v432 = vsel %vm280, %v429, %v431
        %v433 = vrot.slane %v287, 4
        %v434 = vsel %vm280, %v431, %v433
        %v435 = vrot.slane %v261, 4
        %v436 = vrot.slane %v308, 4
        %v437 = vsel %vm280, %v435, %v436
        %v438 = vrot.slane %v290, 4
        %v439 = vsel %vm280, %v436, %v438
        %v440 = vrot.slane %v292, 4
        %v441 = vsel %vm280, %v438, %v440
        %v442 = vrot.slane %v294, 4
        %v443 = vsel %vm280, %v440, %v442
        %v452 = vadd.f32 %v418, %v428
        %v453 = vadd.f32 %v419, %v430
        %v454 = vadd.f32 %v420, %v432
        %v455 = vadd.f32 %v421, %v434
        %v456 = vadd.f32 %v422, %v437
        %v457 = vadd.f32 %v423, %v439
        %v458 = vadd.f32 %v424, %v441
        %v459 = vadd.f32 %v425, %v443
        %vm460 = vcmask 1042432
        %v461 = vrot.slane %v257, 5
        %v462 = vrot.slane %v307, 5
        %v463 = vsel %vm460, %v461, %v462
        %v464 = vrot.slane %v283, 5
        %v465 = vsel %vm460, %v462, %v464
        %v466 = vrot.slane %v285, 5
        %v467 = vsel %vm460, %v464, %v466
        %v468 = vrot.slane %v287, 5
        %v469 = vsel %vm460, %v466, %v468
        %v470 = vrot.slane %v261, 5
        %v471 = vrot.slane %v308, 5
        %v472 = vsel %vm460, %v470, %v471
        %v473 = vrot.slane %v290, 5
        %v474 = vsel %vm460, %v471, %v473
        %v475 = vrot.slane %v292, 5
        %v476 = vsel %vm460, %v473, %v475
        %v477 = vrot.slane %v294, 5
        %v478 = vsel %vm460, %v475, %v477
        %v487 = vadd.f32 %v452, %v463
        %v488 = vadd.f32 %v453, %v465
        %v489 = vadd.f32 %v454, %v467
        %v490 = vadd.f32 %v455, %v469
        %v491 = vadd.f32 %v456, %v472
        %v492 = vadd.f32 %v457, %v474
        %v493 = vadd.f32 %v458, %v476
        %v494 = vadd.f32 %v459, %v478
        %vm495 = vcmask 1041408
        %v496 = vrot.slane %v257, 6
        %v497 = vrot.slane %v307, 6
        %v498 = vsel %vm495, %v496, %v497
        %v499 = vrot.slane %v283, 6
        %v500 = vsel %vm495, %v497, %v499
        %v501 = vrot.slane %v285, 6
        %v502 = vsel %vm495, %v499, %v501
        %v503 = vrot.slane %v287, 6
        %v504 = vsel %vm495, %v501, %v503
        %v505 = vrot.slane %v261, 6
        %v506 = vrot.slane %v308, 6
        %v507 = vsel %vm495, %v505, %v506
        %v508 = vrot.slane %v290, 6
        %v509 = vsel %vm495, %v506, %v508
        %v510 = vrot.slane %v292, 6
        %v511 = vsel %vm495, %v508, %v510
        %v512 = vrot.slane %v294, 6
        %v513 = vsel %vm495, %v510, %v512
        %v522 = vadd.f32 %v487, %v498
        %v523 = vadd.f32 %v488, %v500
        %v524 = vadd.f32 %v489, %v502
        %v525 = vadd.f32 %v490, %v504
        %v526 = vadd.f32 %v491, %v507
        %v527 = vadd.f32 %v492, %v509
        %v528 = vadd.f32 %v493, %v511
        %v529 = vadd.f32 %v494, %v513
        %vm530 = vcmask 1040384
        %v531 = vrot.slane %v257, 7
        %v532 = vrot.slane %v307, 7
        %v533 = vsel %vm530, %v531, %v532
        %v534 = vrot.slane %v283, 7
        %v535 = vsel %vm530, %v532, %v534
        %v536 = vrot.slane %v285, 7
        %v537 = vsel %vm530, %v534, %v536
        %v538 = vrot.slane %v287, 7
        %v539 = vsel %vm530, %v536, %v538
        %v540 = vrot.slane %v261, 7
        %v541 = vrot.slane %v308, 7
        %v542 = vsel %vm530, %v540, %v541
        %v543 = vrot.slane %v290, 7
        %v544 = vsel %vm530, %v541, %v543
        %v545 = vrot.slane %v292, 7
        %v546 = vsel %vm530, %v543, %v545
        %v547 = vrot.slane %v294, 7
        %v548 = vsel %vm530, %v545, %v547
        %v557 = vadd.f32 %v522, %v533
        %v558 = vadd.f32 %v523, %v535
        %v559 = vadd.f32 %v524, %v537
        %v560 = vadd.f32 %v525, %v539
        %v561 = vadd.f32 %v526, %v542
        %v562 = vadd.f32 %v527, %v544
        %v563 = vadd.f32 %v528, %v546
        %v564 = vadd.f32 %v529, %v548
        %v565 = vadd.f32 %v557, %v307
        %v566 = vadd.f32 %v558, %v283
        %v567 = vadd.f32 %v559, %v285
        %v568 = vadd.f32 %v560, %v287
        %v569 = vadd.f32 %v561, %v308
        %v570 = vadd.f32 %v562, %v290
        %v571 = vadd.f32 %v563, %v292
        %v572 = vadd.f32 %v564, %v294
        %v575 = vrot.slane %v309, 1
        %v576 = vsel %vm321, %v329, %v575
        %v577 = vrot.slane %v310, 1
        %v578 = vsel %vm321, %v338, %v577
        %v581 = vadd.f32 %v565, %v326
        %v582 = vadd.f32 %v566, %v328
        %v583 = vadd.f32 %v567, %v330
        %v584 = vadd.f32 %v568, %v576
        %v585 = vadd.f32 %v569, %v335
        %v586 = vadd.f32 %v570, %v337
        %v587 = vadd.f32 %v571, %v339
        %v588 = vadd.f32 %v572, %v578
        %v589 = vrot.slane %v309, 2
        %v590 = vsel %vm356, %v364, %v589
        %v591 = vrot.slane %v310, 2
        %v592 = vsel %vm356, %v373, %v591
        %v595 = vadd.f32 %v581, %v361
        %v596 = vadd.f32 %v582, %v363
        %v597 = vadd.f32 %v583, %v365
        %v598 = vadd.f32 %v584, %v590
        %v599 = vadd.f32 %v585, %v370
        %v600 = vadd.f32 %v586, %v372
        %v601 = vadd.f32 %v587, %v374
        %v602 = vadd.f32 %v588, %v592
        %v603 = vrot.slane %v309, 3
        %v604 = vsel %vm391, %v399, %v603
        %v605 = vrot.slane %v310, 3
        %v606 = vsel %vm391, %v408, %v605
        %v609 = vadd.f32 %v595, %v396
        %v610 = vadd.f32 %v596, %v398
        %v611 = vadd.f32 %v597, %v400
        %v612 = vadd.f32 %v598, %v604
        %v613 = vadd.f32 %v599, %v405
        %v614 = vadd.f32 %v600, %v407
        %v615 = vadd.f32 %v601, %v409
        %v616 = vadd.f32 %v602, %v606
        %v617 = vrot.slane %v309, 4
        %v618 = vsel %vm280, %v433, %v617
        %v619 = vrot.slane %v310, 4
        %v620 = vsel %vm280, %v442, %v619
        %v623 = vadd.f32 %v609, %v430
        %v624 = vadd.f32 %v610, %v432
        %v625 = vadd.f32 %v611, %v434
        %v626 = vadd.f32 %v612, %v618
        %v627 = vadd.f32 %v613, %v439
        %v628 = vadd.f32 %v614, %v441
        %v629 = vadd.f32 %v615, %v443
        %v630 = vadd.f32 %v616, %v620
        %v631 = vrot.slane %v309, 5
        %v632 = vsel %vm460, %v468, %v631
        %v633 = vrot.slane %v310, 5
        %v634 = vsel %vm460, %v477, %v633
        %v637 = vadd.f32 %v623, %v465
        %v638 = vadd.f32 %v624, %v467
        %v639 = vadd.f32 %v625, %v469
        %v640 = vadd.f32 %v626, %v632
        %v641 = vadd.f32 %v627, %v474
        %v642 = vadd.f32 %v628, %v476
        %v643 = vadd.f32 %v629, %v478
        %v644 = vadd.f32 %v630, %v634
        %v645 = vrot.slane %v309, 6
        %v646 = vsel %vm495, %v503, %v645
        %v647 = vrot.slane %v310, 6
        %v648 = vsel %vm495, %v512, %v647
        %v651 = vadd.f32 %v637, %v500
        %v652 = vadd.f32 %v638, %v502
        %v653 = vadd.f32 %v639, %v504
        %v654 = vadd.f32 %v640, %v646
        %v655 = vadd.f32 %v641, %v509
        %v656 = vadd.f32 %v642, %v511
        %v657 = vadd.f32 %v643, %v513
        %v658 = vadd.f32 %v644, %v648
        %v659 = vrot.slane %v309, 7
        %v660 = vsel %vm530, %v538, %v659
        %v661 = vrot.slane %v310, 7
        %v662 = vsel %vm530, %v547, %v661
        %v665 = vadd.f32 %v651, %v535
        %v666 = vadd.f32 %v652, %v537
        %v667 = vadd.f32 %v653, %v539
        %v668 = vadd.f32 %v654, %v660
        %v669 = vadd.f32 %v655, %v544
        %v670 = vadd.f32 %v656, %v546
        %v671 = vadd.f32 %v657, %v548
        %v672 = vadd.f32 %v658, %v662
        %v673 = vadd.f32 %v665, %v283
        %v674 = vadd.f32 %v666, %v285
        %v675 = vadd.f32 %v667, %v287
        %v676 = vadd.f32 %v668, %v309
        %v677 = vadd.f32 %v669, %v290
        %v678 = vadd.f32 %v670, %v292
        %v679 = vadd.f32 %v671, %v294
        %v680 = vadd.f32 %v672, %v310
        %v681 = vrot.slane %v265, 1
        %v682 = vsel %vm321, %v575, %v681
        %v683 = vrot.slane %v269, 1
        %v684 = vsel %vm321, %v577, %v683
        %v687 = vadd.f32 %v673, %v328
        %v688 = vadd.f32 %v674, %v330
        %v689 = vadd.f32 %v675, %v576
        %v690 = vadd.f32 %v676, %v682
        %v691 = vadd.f32 %v677, %v337
        %v692 = vadd.f32 %v678, %v339
        %v693 = vadd.f32 %v679, %v578
        %v694 = vadd.f32 %v680, %v684
        %v695 = vrot.slane %v265, 2
        %v696 = vsel %vm356, %v589, %v695
        %v697 = vrot.slane %v269, 2
        %v698 = vsel %vm356, %v591, %v697
        %v701 = vadd.f32 %v687, %v363
        %v702 = vadd.f32 %v688, %v365
        %v703 = vadd.f32 %v689, %v590
        %v704 = vadd.f32 %v690, %v696
        %v705 = vadd.f32 %v691, %v372
        %v706 = vadd.f32 %v692, %v374
        %v707 = vadd.f32 %v693, %v592
        %v708 = vadd.f32 %v694, %v698
        %v709 = vrot.slane %v265, 3
        %v710 = vsel %vm391, %v603, %v709
        %v711 = vrot.slane %v269, 3
        %v712 = vsel %vm391, %v605, %v711
        %v715 = vadd.f32 %v701, %v398
        %v716 = vadd.f32 %v702, %v400
        %v717 = vadd.f32 %v703, %v604
        %v718 = vadd.f32 %v704, %v710
        %v719 = vadd.f32 %v705, %v407
        %v720 = vadd.f32 %v706, %v409
        %v721 = vadd.f32 %v707, %v606
        %v722 = vadd.f32 %v708, %v712
        %v723 = vrot.slane %v265, 4
        %v724 = vsel %vm280, %v617, %v723
        %v725 = vrot.slane %v269, 4
        %v726 = vsel %vm280, %v619, %v725
        %v729 = vadd.f32 %v715, %v432
        %v730 = vadd.f32 %v716, %v434
        %v731 = vadd.f32 %v717, %v618
        %v732 = vadd.f32 %v718, %v724
        %v733 = vadd.f32 %v719, %v441
        %v734 = vadd.f32 %v720, %v443
        %v735 = vadd.f32 %v721, %v620
        %v736 = vadd.f32 %v722, %v726
        %v737 = vrot.slane %v265, 5
        %v738 = vsel %vm460, %v631, %v737
        %v739 = vrot.slane %v269, 5
        %v740 = vsel %vm460, %v633, %v739
        %v743 = vadd.f32 %v729, %v467
        %v744 = vadd.f32 %v730, %v469
        %v745 = vadd.f32 %v731, %v632
        %v746 = vadd.f32 %v732, %v738
        %v747 = vadd.f32 %v733, %v476
        %v748 = vadd.f32 %v734, %v478
        %v749 = vadd.f32 %v735, %v634
        %v750 = vadd.f32 %v736, %v740
        %v751 = vrot.slane %v265, 6
        %v752 = vsel %vm495, %v645, %v751
        %v753 = vrot.slane %v269, 6
        %v754 = vsel %vm495, %v647, %v753
        %v757 = vadd.f32 %v743, %v502
        %v758 = vadd.f32 %v744, %v504
        %v759 = vadd.f32 %v745, %v646
        %v760 = vadd.f32 %v746, %v752
        %v761 = vadd.f32 %v747, %v511
        %v762 = vadd.f32 %v748, %v513
        %v763 = vadd.f32 %v749, %v648
        %v764 = vadd.f32 %v750, %v754
        %v765 = vrot.slane %v265, 7
        %v766 = vsel %vm530, %v659, %v765
        %v767 = vrot.slane %v269, 7
        %v768 = vsel %vm530, %v661, %v767
        %v771 = vadd.f32 %v757, %v537
        %v772 = vadd.f32 %v758, %v539
        %v773 = vadd.f32 %v759, %v660
        %v774 = vadd.f32 %v760, %v766
        %v775 = vadd.f32 %v761, %v546
        %v776 = vadd.f32 %v762, %v548
        %v777 = vadd.f32 %v763, %v662
        %v778 = vadd.f32 %v764, %v768
        %v779 = vadd.f32 %v771, %v285
        %v780 = vadd.f32 %v772, %v287
        %v781 = vadd.f32 %v773, %v309
        %v782 = vadd.f32 %v774, %v265
        %v783 = vadd.f32 %v775, %v292
        %v784 = vadd.f32 %v776, %v294
        %v785 = vadd.f32 %v777, %v310
        %v786 = vadd.f32 %v778, %v269
        %v787 = vmul.f32 %v779, 0.04
        %v788 = vmul.f32 %v780, 0.04
        %v789 = vmul.f32 %v781, 0.04
        %v790 = vmul.f32 %v782, 0.04
        %v791 = vmul.f32 %v783, 0.04
        %v792 = vmul.f32 %v784, 0.04
        %v793 = vmul.f32 %v785, 0.04
        %v794 = vmul.f32 %v786, 0.04
        %v795 = vsub.f32 %v246, %v787
        %v796 = vsub.f32 %v247, %v788
        %v797 = vsub.f32 %v248, %v789
        %v798 = vsub.f32 %v249, %v790
        %v799 = vsub.f32 %v250, %v791
        %v800 = vsub.f32 %v251, %v792
        %v801 = vsub.f32 %v252, %v793
        %v802 = vsub.f32 %v253, %v794
        %803 = vst [vmem:[%s234] sm:$0xff] %v795
        %804 = vst [vmem:[%s234 + $0x8] sm:$0xff] %v796
        %805 = vst [vmem:[%s234 + $0x10] sm:$0xff] %v797
        %806 = vst [vmem:[%s234 + $0x18] sm:$0xff] %v798
        %807 = vst [vmem:[%s234 + $0x20] sm:$0xff] %v799
        %808 = vst [vmem:[%s234 + $0x28] sm:$0xff] %v800
        %809 = vst [vmem:[%s234 + $0x30] sm:$0xff] %v801
        %810 = vst [vmem:[%s234 + $0x38] sm:$0xff] %v802
        %v811 = vld [vmem:[%s209] sm:$0xff]
        %v812 = vld [vmem:[%s209 + $0x8] sm:$0xff]
        %v813 = vld [vmem:[%s209 + $0x10] sm:$0xff]
        %v814 = vld [vmem:[%s209 + $0x18] sm:$0xff]
        %v815 = vld [vmem:[%s209 + $0x20] sm:$0xff]
        %v816 = vld [vmem:[%s209 + $0x28] sm:$0xff]
        %v817 = vld [vmem:[%s209 + $0x30] sm:$0xff]
        %v818 = vld [vmem:[%s209 + $0x38] sm:$0xff]
        %v819 = vadd.f32 %v811, %v787
        %v820 = vadd.f32 %v812, %v788
        %v821 = vadd.f32 %v813, %v789
        %v822 = vadd.f32 %v814, %v790
        %v823 = vadd.f32 %v815, %v791
        %v824 = vadd.f32 %v816, %v792
        %v825 = vadd.f32 %v817, %v793
        %v826 = vadd.f32 %v818, %v794
        %827 = vst [vmem:[%s241] sm:$0xff] %v819
        %828 = vst [vmem:[%s241 + $0x8] sm:$0xff] %v820
        %829 = vst [vmem:[%s241 + $0x10] sm:$0xff] %v821
        %830 = vst [vmem:[%s241 + $0x18] sm:$0xff] %v822
        %831 = vst [vmem:[%s241 + $0x20] sm:$0xff] %v823
        %832 = vst [vmem:[%s241 + $0x28] sm:$0xff] %v824
        %833 = vst [vmem:[%s241 + $0x30] sm:$0xff] %v825
        %834 = vst [vmem:[%s241 + $0x38] sm:$0xff] %v826
        %s835 = sand.u32 %s87, 1
        %s836 = scalar_lea.sflag [#allocation4], %s835
        %s837 = sand.u32 %s87, 1
        %s838 = smul.addr %s837, 64
        %s839 = scalar_lea.vmem [#allocation7], %s838
        %s840 = sand.u32 %s113, 1
        %s841 = scalar_lea.sflag [#allocation9], %s840
        %s842 = sand.u32 %s113, 1
        %s843 = smul.addr %s842, 64
        %s844 = scalar_lea.vmem [#allocation8], %s843
        // Predicated region
        $region37: #{tpu_custom_call.1} parent=27 // pred_check
          %p845 = pneg %p97
        $region38: #{tpu_custom_call.1} parent=27 // pred_check_branch
          %847 = sbr.rel (%p845) target = $region40
        $region39: #{tpu_custom_call.1} parent=27 // pred_region
          %s848 = smul.u32 2, %s27
          %s850 = ssub.s32 1024, 1024
          %851 = vsyncadd %s836, %s850
          %s852 = smul.addr %s848, 4
          %s853 = smul.addr %s852, 128
          %s854 = scalar_lea.hbm %s2, %s853
          %s855 = sshll.u32 %s839, 4
          %s856 = int_to_ptr.vmem [resolvable:$true] %s855
          %861 = dma.vmem_to_hbm [thread:$0]  %s856, 1024, %s854, %s836, 128, 128, 8
        $region40: #{tpu_custom_call.1} parent=27 // pred_fallthru
          _
        // Predicated region
        $region41: #{tpu_custom_call.1} parent=27 // pred_check
          %p862 = pneg %p123
        $region42: #{tpu_custom_call.1} parent=27 // pred_check_branch
          %864 = sbr.rel (%p862) target = $region44
        $region43: #{tpu_custom_call.1} parent=27 // pred_region
          %s865 = smul.u32 2, %s27
          %s867 = ssub.s32 1024, 1024
          %868 = vsyncadd %s841, %s867
          %s869 = smul.addr %s865, 4
          %s870 = smul.addr %s869, 128
          %s871 = scalar_lea.hbm %s3, %s870
          %s872 = sshll.u32 %s844, 4
          %s873 = int_to_ptr.vmem [resolvable:$true] %s872
          %878 = dma.vmem_to_hbm [thread:$0]  %s873, 1024, %s871, %s841, 128, 128, 8
        $region44: #{tpu_custom_call.1} parent=27 // pred_fallthru
          _
      $region28: #{tpu_custom_call.1} parent=5 // pred_fallthru
        _
      %p879 = scmp.le.s32.totalorder 2, %s22
      // Predicated region
      $region45: #{tpu_custom_call.1} parent=5 // pred_check
        %p880 = pneg %p879
      $region46: #{tpu_custom_call.1} parent=5 // pred_check_branch
        %882 = sbr.rel (%p880) target = $region48
      $region47: #{tpu_custom_call.1} parent=5 // pred_region
        %s883 = ssub.s32 %s22, 2
        // Predicated region
        $region49: #{tpu_custom_call.1} parent=47 // pred_check
          %p884 = pneg %p103
        $region50: #{tpu_custom_call.1} parent=47 // pred_check_branch
          %886 = sbr.rel (%p884) target = $region52
        $region51: #{tpu_custom_call.1} parent=47 // pred_region
          %s887 = sand.u32 %s88, 1
          %s888 = scalar_lea.sflag [#allocation4], %s887
          %s889 = sand.u32 %s88, 1
          %s890 = smul.addr %s889, 64
          %s891 = scalar_lea.vmem [#allocation7], %s890
          %892 = dma.done %s888, 1024
        $region52: #{tpu_custom_call.1} parent=47 // pred_fallthru
          _
        // Predicated region
        $region53: #{tpu_custom_call.1} parent=47 // pred_check
          %p893 = pneg %p129
        $region54: #{tpu_custom_call.1} parent=47 // pred_check_branch
          %895 = sbr.rel (%p893) target = $region56
        $region55: #{tpu_custom_call.1} parent=47 // pred_region
          %s896 = sand.u32 %s114, 1
          %s897 = scalar_lea.sflag [#allocation9], %s896
          %s898 = sand.u32 %s114, 1
          %s899 = smul.addr %s898, 64
          %s900 = scalar_lea.vmem [#allocation8], %s899
          %901 = dma.done %s897, 1024
        $region56: #{tpu_custom_call.1} parent=47 // pred_fallthru
          _
      $region48: #{tpu_custom_call.1} parent=5 // pred_fallthru
        _
    $region6: #{tpu_custom_call.1} parent=1 // loop_footer
      %s26 = sadd.s32 1, %s22
    $region7: #{tpu_custom_call.1} parent=1 // loop_footer_branch
      %21 = sbr.rel target = $region3
    $region8: #{tpu_custom_call.1} parent=1 // loop_exit
      _
    %902 = vsyncpa [#allocation3], 1
    %s903 = scalar_lea.sflag [#allocation3], 1
    %904 = vsyncpa %s903, 1
    %905 = vsyncpa [#allocation6], 1
    %s906 = scalar_lea.sflag [#allocation6], 1
    %907 = vsyncpa %s906, 1
    %908 = vsyncpa [#allocation4], 1
    %s909 = scalar_lea.sflag [#allocation4], 1
    %910 = vsyncpa %s909, 1
    %911 = vsyncpa [#allocation9], 1
    %s912 = scalar_lea.sflag [#allocation9], 1
    %913 = vsyncpa %s912, 1

</llo_original>
